<compile_context>
chip_gen: v5e
topology: v5e:2x2
jax: 0.10.0
libtpu: 0.0.40
codegen_flags: <defaults>
</compile_context>

<pallas_src>
import jax
import jax.numpy as jnp
from jax.experimental import pallas as pl
from jax.experimental.pallas import tpu as pltpu


def _round_up(n, m):
    return ((n + m - 1) // m) * m


def _cdiv(a, b):
    return (a + b - 1) // b


# One x block (single buffer); BlockSpec double-buffers it -> 2x this in VMEM.
_X_BLOCK_BUDGET = 8 * 1024 * 1024
_VMEM_LIMIT = 32 * 1024 * 1024
_MAX_TB = 512
_TARGET_BATCH_TILES = 8


def _pick_tiles(B, T, D):
    """Pick (TB, TT) batch/sequence tile sizes for f32 x of shape (B, T, D)."""
    row_bytes = T * D * 4                       # one batch row, full T
    if 8 * row_bytes <= _X_BLOCK_BUDGET:
        # Full-T blocks: grow TB within the block budget.
        TT = T
        tb_cap = (_X_BLOCK_BUDGET // row_bytes) // 8 * 8
        TB = max(8, min(tb_cap, _MAX_TB))
        # Keep >= ~_TARGET_BATCH_TILES grid steps along batch when B allows
        # (pipelining overlap + both TensorCores busy on v7x).
        TB = min(TB, max(8, _round_up(_cdiv(B, _TARGET_BATCH_TILES), 8)))
        TB = min(TB, _round_up(B, 8))
    else:
        # Large T*D: split the sequence axis, keep the batch tile minimal.
        TB = 8
        tt_cap = (_X_BLOCK_BUDGET // (TB * D * 4)) // 8 * 8
        TT = max(8, tt_cap)
        TT = min(TT, _round_up(T, 8))
    return TB, TT


def wrapped_model_kernel(x_ref, w_ref, bias_ref, lengths_ref, logits_ref,
                         cnt_acc, sum_acc):
    t_step = pl.program_id(1)

    @pl.when(t_step == 0)
    def _():
        cnt_acc[...] = jnp.zeros_like(cnt_acc)
        sum_acc[...] = jnp.zeros_like(sum_acc)

    x = x_ref[...]                                           # (TB, TT, D) f32

    # lengths contribution: (|x|.sum(-1) > 0) over this sequence tile.
    # abs-sum (not any(x != 0)) so NaN timesteps count as invalid, like torch.
    valid = jnp.sum(jnp.abs(x), axis=-1) > 0.0               # (TB, TT) bool
    cnt_acc[...] += jnp.sum(valid.astype(jnp.int32), axis=1, keepdims=True)

    # Invalid timesteps are exactly all-zero, so the unmasked tile sum equals
    # the valid-masked sum -> no (TB, TT, D) mask temporary.
    sum_acc[...] += jnp.sum(x, axis=1)                       # (TB, D)

    @pl.when(t_step == pl.num_programs(1) - 1)
    def _():
        cnt = cnt_acc[...]                                   # (TB, 1) int32
        lengths_ref[...] = cnt
        denom = jnp.maximum(cnt.astype(jnp.float32), 1.0)    # (TB, 1)
        logits = jnp.dot(sum_acc[...], w_ref[...],
                         preferred_element_type=jnp.float32)  # (TB, C)
        # Normalize after the matmul: scales (TB, C) instead of (TB, D).
        logits_ref[...] = logits / denom + bias_ref[...]


def wrapped_model_forward(x, w, task_bias, task_id):
    """x: (B, T, D) f32; w: (D, C) f32; task_bias: (n_tasks, C); task_id: int."""
    B, T, D = x.shape
    _, C = task_bias.shape

    TB, TT = _pick_tiles(B, T, D)
    B_pad = _round_up(B, TB)
    T_pad = _round_up(T, TT)
    if (B_pad, T_pad) != (B, T):
        # Padded rows / timesteps are all-zero -> invalid, contribute nothing.
        x = jnp.pad(x, ((0, B_pad - B), (0, T_pad - T), (0, 0)))

    # task_id is a static attribute of WrappedModel -> static row select here
    # (no in-kernel dynamic slice, no unchecked OOB).
    bias_row = task_bias[task_id][None, :]                    # (1, C)

    grid = (B_pad // TB, T_pad // TT)

    lengths_pad, logits_pad = pl.pallas_call(
        wrapped_model_kernel,
        out_shape=(
            jax.ShapeDtypeStruct((B_pad, 1), jnp.int32),
            jax.ShapeDtypeStruct((B_pad, C), jnp.float32),
        ),
        grid_spec=pltpu.PrefetchScalarGridSpec(
            num_scalar_prefetch=0,
            grid=grid,
            in_specs=[
                pl.BlockSpec((TB, TT, D), lambda i, t: (i, t, 0)),
                pl.BlockSpec((D, C), lambda i, t: (0, 0)),
                pl.BlockSpec((1, C), lambda i, t: (0, 0)),
            ],
            out_specs=(
                pl.BlockSpec((TB, 1), lambda i, t: (i, 0)),
                pl.BlockSpec((TB, C), lambda i, t: (i, 0)),
            ),
            scratch_shapes=[
                pltpu.VMEM((TB, 1), jnp.int32),    # running valid count
                pltpu.VMEM((TB, D), jnp.float32),  # running masked x sum
            ],
        ),
        compiler_params=pltpu.CompilerParams(
            # On v7x, pltpu.CORE_PARALLEL on the batch axis splits the grid
            # across both TensorCores; "parallel" is the portable request.
            dimension_semantics=("parallel", "arbitrary"),
            vmem_limit_bytes=_VMEM_LIMIT,
        ),
    )(x, w, bias_row)

    lengths = lengths_pad[:B, 0]
    logits = logits_pad[:B]
    # Exact mask reconstruction from lengths: (B, T) traffic only, avoids a
    # lane-sparse int8 store from the kernel and works under any T tiling.
    mask = jnp.arange(T, dtype=jnp.int32)[None, :] < lengths[:, None]
    return mask, lengths, logits


if __name__ == "__main__":
    B, T, D, C, N_TASKS = 2, 8, 32, 4, 3
    TASK_ID = 1

    key = jax.random.PRNGKey(0)
    kx, kw, kb = jax.random.split(key, 3)

    x = jax.random.normal(kx, (B, T, D), dtype=jnp.float32)
    # Zero-pad the tail of each sequence so lengths differ per batch element.
    pad_mask = jnp.array([[1] * 6 + [0] * 2,
                          [1] * 4 + [0] * 4], dtype=jnp.float32)   # (B, T)
    x = x * pad_mask[:, :, None]

    w = 0.02 * jax.random.normal(kw, (D, C), dtype=jnp.float32)
    task_bias = 0.1 * jax.random.normal(kb, (N_TASKS, C), dtype=jnp.float32)

    mask, lengths, logits = wrapped_model_forward(x, w, task_bias, TASK_ID)
    jax.block_until_ready((mask, lengths, logits))

    # Pure-JAX reference of the WrappedModel semantics + stand-in head.
    lengths_ref = jnp.sum(jnp.sum(jnp.abs(x), axis=-1) > 0, axis=1)
    mask_ref = jnp.arange(T)[None, :] < lengths_ref[:, None]
    pooled_ref = jnp.sum(x * mask_ref[:, :, None], axis=1) / jnp.maximum(
        lengths_ref[:, None].astype(jnp.float32), 1.0)
    logits_ref = pooled_ref @ w + task_bias[TASK_ID][None, :]

    assert bool(jnp.all(lengths == lengths_ref))
    assert bool(jnp.all(mask == mask_ref))
    assert bool(jnp.max(jnp.abs(logits - logits_ref)) < 1e-4)

    print("KERNEL_OK")
</pallas_src>

<mosaic_0001>
module attributes {stable_mosaic.version = 11 : i64} {
  func.func @wrapped_model_kernel(%arg0: i32, %arg1: i32, %arg2: memref<8x8x32xf32, #tpu.memory_space<vmem>>, %arg3: memref<32x4xf32, #tpu.memory_space<vmem>>, %arg4: memref<1x4xf32, #tpu.memory_space<vmem>>, %arg5: memref<8x1xi32, #tpu.memory_space<vmem>>, %arg6: memref<8x4xf32, #tpu.memory_space<vmem>>, %arg7: memref<8x1xi32, #tpu.memory_space<vmem>>, %arg8: memref<8x32xf32, #tpu.memory_space<vmem>>) attributes {dimension_semantics = [#tpu.dimension_semantics<parallel>, #tpu.dimension_semantics<arbitrary>], iteration_bounds = array<i64: 1, 1>, scalar_prefetch = 0 : i64, scratch_operands = 2 : i64, tpu.core_type = #tpu.core_type<tc>, window_params = [{transform_indices = @transform_0, window_bounds = array<i64: 8, 8, 32>}, {pipeline_mode = #tpu.pipeline_mode<synchronous>, transform_indices = @transform_1, window_bounds = array<i64: 32, 4>}, {pipeline_mode = #tpu.pipeline_mode<synchronous>, transform_indices = @transform_2, window_bounds = array<i64: 1, 4>}, {transform_indices = @transform_3, window_bounds = array<i64: 8, 1>}, {transform_indices = @transform_4, window_bounds = array<i64: 8, 4>}]} {
    %c0_i32 = arith.constant 0 : i32
    %0 = arith.cmpi eq, %arg1, %c0_i32 : i32
    %1 = arith.extui %0 : i1 to i32
    %c0_i32_0 = arith.constant 0 : i32
    %2 = arith.cmpi ne, %1, %c0_i32_0 : i32
    scf.if %2 {
      %c0_i32_16 = arith.constant 0 : i32
      %21 = vector.broadcast %c0_i32_16 : i32 to vector<8x1xi32>
      %c0_17 = arith.constant 0 : index
      %c0_18 = arith.constant 0 : index
      %22 = vector.load %arg7[%c0_17, %c0_18] : memref<8x1xi32, #tpu.memory_space<vmem>>, vector<8x1xi32>
      tpu.vector_store %arg7[%c0_17, %c0_18], %21 {strides = array<i32>} : memref<8x1xi32, #tpu.memory_space<vmem>>, vector<8x1xi32>,
      %cst_19 = arith.constant 0.000000e+00 : f32
      %23 = vector.broadcast %cst_19 : f32 to vector<8x32xf32>
      %c0_20 = arith.constant 0 : index
      %c0_21 = arith.constant 0 : index
      %24 = vector.load %arg8[%c0_20, %c0_21] : memref<8x32xf32, #tpu.memory_space<vmem>>, vector<8x32xf32>
      tpu.vector_store %arg8[%c0_20, %c0_21], %23 {strides = array<i32>} : memref<8x32xf32, #tpu.memory_space<vmem>>, vector<8x32xf32>,
    } else {
    }
    %c0 = arith.constant 0 : index
    %c0_1 = arith.constant 0 : index
    %c0_2 = arith.constant 0 : index
    %3 = vector.load %arg2[%c0, %c0_1, %c0_2] : memref<8x8x32xf32, #tpu.memory_space<vmem>>, vector<8x8x32xf32>
    %4 = math.absf %3 : vector<8x8x32xf32>
    %cst = arith.constant dense<0.000000e+00> : vector<8x8xf32>
    %5 = vector.multi_reduction <add>, %4, %cst [2] : vector<8x8x32xf32> to vector<8x8xf32>
    %cst_3 = arith.constant 0.000000e+00 : f32
    %6 = vector.broadcast %cst_3 : f32 to vector<8x8xf32>
    %7 = arith.cmpf ogt, %5, %6 : vector<8x8xf32>
    %c0_4 = arith.constant 0 : index
    %c0_5 = arith.constant 0 : index
    %8 = vector.load %arg7[%c0_4, %c0_5] : memref<8x1xi32, #tpu.memory_space<vmem>>, vector<8x1xi32>
    %9 = arith.extui %7 : vector<8x8xi1> to vector<8x8xi32>
    %cst_6 = arith.constant dense<0> : vector<8xi32>
    %10 = vector.multi_reduction <add>, %9, %cst_6 [1] : vector<8x8xi32> to vector<8xi32>
    %11 = vector.shape_cast %10 : vector<8xi32> to vector<8x1xi32>
    %12 = arith.addi %8, %11 : vector<8x1xi32>
    %c0_7 = arith.constant 0 : index
    %c0_8 = arith.constant 0 : index
    %13 = vector.load %arg7[%c0_7, %c0_8] : memref<8x1xi32, #tpu.memory_space<vmem>>, vector<8x1xi32>
    tpu.vector_store %arg7[%c0_7, %c0_8], %12 {strides = array<i32>} : memref<8x1xi32, #tpu.memory_space<vmem>>, vector<8x1xi32>,
    %c0_9 = arith.constant 0 : index
    %c0_10 = arith.constant 0 : index
    %14 = vector.load %arg8[%c0_9, %c0_10] : memref<8x32xf32, #tpu.memory_space<vmem>>, vector<8x32xf32>
    %cst_11 = arith.constant dense<0.000000e+00> : vector<8x32xf32>
    %15 = vector.multi_reduction <add>, %3, %cst_11 [1] : vector<8x8x32xf32> to vector<8x32xf32>
    %16 = arith.addf %14, %15 : vector<8x32xf32>
    %c0_12 = arith.constant 0 : index
    %c0_13 = arith.constant 0 : index
    %17 = vector.load %arg8[%c0_12, %c0_13] : memref<8x32xf32, #tpu.memory_space<vmem>>, vector<8x32xf32>
    tpu.vector_store %arg8[%c0_12, %c0_13], %16 {strides = array<i32>} : memref<8x32xf32, #tpu.memory_space<vmem>>, vector<8x32xf32>,
    %c0_i32_14 = arith.constant 0 : i32
    %18 = arith.cmpi eq, %arg1, %c0_i32_14 : i32
    %19 = arith.extui %18 : i1 to i32
    %c0_i32_15 = arith.constant 0 : i32
    %20 = arith.cmpi ne, %19, %c0_i32_15 : i32
    scf.if %20 {
      %c0_16 = arith.constant 0 : index
      %c0_17 = arith.constant 0 : index
      %21 = vector.load %arg7[%c0_16, %c0_17] : memref<8x1xi32, #tpu.memory_space<vmem>>, vector<8x1xi32>
      %c0_18 = arith.constant 0 : index
      %c0_19 = arith.constant 0 : index
      %22 = vector.load %arg5[%c0_18, %c0_19] : memref<8x1xi32, #tpu.memory_space<vmem>>, vector<8x1xi32>
      tpu.vector_store %arg5[%c0_18, %c0_19], %21 {strides = array<i32>} : memref<8x1xi32, #tpu.memory_space<vmem>>, vector<8x1xi32>,
      %23 = arith.sitofp %21 : vector<8x1xi32> to vector<8x1xf32>
      %cst_20 = arith.constant 1.000000e+00 : f32
      %24 = vector.broadcast %cst_20 : f32 to vector<8x1xf32>
      %25 = arith.maximumf %23, %24 : vector<8x1xf32>
      %c0_21 = arith.constant 0 : index
      %c0_22 = arith.constant 0 : index
      %26 = vector.load %arg8[%c0_21, %c0_22] : memref<8x32xf32, #tpu.memory_space<vmem>>, vector<8x32xf32>
      %c0_23 = arith.constant 0 : index
      %c0_24 = arith.constant 0 : index
      %27 = vector.load %arg3[%c0_23, %c0_24] : memref<32x4xf32, #tpu.memory_space<vmem>>, vector<32x4xf32>
      %cst_25 = arith.constant dense<0.000000e+00> : vector<8x4xf32>
      %28 = tpu.matmul %26, %27, %cst_25 {dimension_numbers = #tpu.dot_dimension_numbers<[1], [0], [0], [1], [0, 0, 1, 1], [], []>} : vector<8x32xf32>, vector<32x4xf32>, vector<8x4xf32> -> vector<8x4xf32>
      %29 = vector.broadcast %25 : vector<8x1xf32> to vector<8x4xf32>
      %30 = arith.divf %28, %29 : vector<8x4xf32>
      %c0_26 = arith.constant 0 : index
      %c0_27 = arith.constant 0 : index
      %31 = vector.load %arg4[%c0_26, %c0_27] : memref<1x4xf32, #tpu.memory_space<vmem>>, vector<1x4xf32>
      %32 = vector.broadcast %31 : vector<1x4xf32> to vector<8x4xf32>
      %33 = arith.addf %30, %32 : vector<8x4xf32>
      %c0_28 = arith.constant 0 : index
      %c0_29 = arith.constant 0 : index
      %34 = vector.load %arg6[%c0_28, %c0_29] : memref<8x4xf32, #tpu.memory_space<vmem>>, vector<8x4xf32>
      tpu.vector_store %arg6[%c0_28, %c0_29], %33 {strides = array<i32>} : memref<8x4xf32, #tpu.memory_space<vmem>>, vector<8x4xf32>,
    } else {
    }
    return
  }
  func.func @transform_0(%arg0: i32, %arg1: i32) -> (i32, i32, i32) {
    %c0_i32 = arith.constant 0 : i32
    %c0_i32_0 = arith.constant 0 : i32
    return %arg0, %arg1, %c0_i32 : i32, i32, i32
  }
  func.func @transform_1(%arg0: i32, %arg1: i32) -> (i32, i32) {
    %c0_i32 = arith.constant 0 : i32
    %c0_i32_0 = arith.constant 0 : i32
    %c0_i32_1 = arith.constant 0 : i32
    return %c0_i32, %c0_i32_0 : i32, i32
  }
  func.func @transform_2(%arg0: i32, %arg1: i32) -> (i32, i32) {
    %c0_i32 = arith.constant 0 : i32
    %c0_i32_0 = arith.constant 0 : i32
    %c0_i32_1 = arith.constant 0 : i32
    return %c0_i32, %c0_i32_0 : i32, i32
  }
  func.func @transform_3(%arg0: i32, %arg1: i32) -> (i32, i32) {
    %c0_i32 = arith.constant 0 : i32
    %c0_i32_0 = arith.constant 0 : i32
    return %arg0, %c0_i32 : i32, i32
  }
  func.func @transform_4(%arg0: i32, %arg1: i32) -> (i32, i32) {
    %c0_i32 = arith.constant 0 : i32
    %c0_i32_0 = arith.constant 0 : i32
    return %arg0, %c0_i32 : i32, i32
  }
}

</mosaic_0001>

<llo_original>
// kernel: tpu_custom_call.1
$region0: #{tpu_custom_call.1}
  #allocation0 [shape = 'u32[]', space=smem, size = 0x4, offset = 0x4, fixed_abs, tag = 'smem constant byte address 0x4 - core index']
  #allocation1 [shape = 'u32[72,128]{1,0:T(1,128)}', space=vmem, size = 0x9000, scoped, tag = 'internal scratch']
  #allocation2 [shape = 's32[8,1]{1,0:T(8,128)}', space=vmem, size = 0x1000, scoped, tag = 'scratch operand']
  #allocation3 [shape = 'f32[8,32]{1,0:T(8,128)}', space=vmem, size = 0x1000, scoped, tag = 'scratch operand']
  %s0 = inlined_call_operand.hbm [shape: f32[8,8,32], index: 0, kind: input, shape index: {}]
  %s1 = inlined_call_operand.vmem [shape: f32[32,4], index: 1, kind: input, shape index: {}]
  %s2 = inlined_call_operand.vmem [shape: f32[1,4], index: 2, kind: input, shape index: {}]
  %s3 = inlined_call_operand.vmem [shape: s32[8,1], index: 3, kind: output, shape index: {0}]
  %s4 = inlined_call_operand.vmem [shape: f32[8,4], index: 4, kind: output, shape index: {1}]
  %5 = xla_tuple %s3, %s4
  %s6 = sld [smem:[#allocation0]]
  $region42: #{tpu_custom_call.1} parent=0
    _
  %s8 = ssub.s32 1, %s6
  %s9 = scalar_select 0, %s8, %s6
  $region1: #{tpu_custom_call.1} parent=0
    #allocation4 [shape = 'u8[32768]{0}', space=vmem, size = 0x8000, scoped, tag = 'input window, operand 0, single buffered']
    #allocation5 [shape = 's32[1]{0}', space=sflag, size = 0x4, scoped, tag = 'scoped memory for tpu_custom_call.1']
    %10 = vsyncpa [#allocation5], 0
    // Predicated region
    $region2: #{tpu_custom_call.1} parent=1 // pred_check
      _
    $region3: #{tpu_custom_call.1} parent=1 // pred_check_branch
      %12 = sbr.rel (0) target = $region5
    $region4: #{tpu_custom_call.1} parent=1 // pred_region
      %14 = vsyncadd [#allocation5], 0
      %s15 = sshll.u32 %s0, 4
      %s16 = int_to_ptr.hbm [resolvable:$true] %s15
      %s17 = sshll.u32 [#allocation4], 4
      %s18 = int_to_ptr.vmem [resolvable:$true] %s17
      %23 = dma.hbm_to_vmem [thread:$0]  %s16, 1024, %s18, [#allocation5], 128, 128, 8
    $region5: #{tpu_custom_call.1} parent=1 // pred_fallthru
      _
    // Predicated region
    $region6: #{tpu_custom_call.1} parent=1 // pred_check
      _
    $region7: #{tpu_custom_call.1} parent=1 // pred_check_branch
      %25 = sbr.rel (0) target = $region9
    $region8: #{tpu_custom_call.1} parent=1 // pred_region
      _
    $region9: #{tpu_custom_call.1} parent=1 // pred_fallthru
      _
    // Predicated region
    $region10: #{tpu_custom_call.1} parent=1 // pred_check
      _
    $region11: #{tpu_custom_call.1} parent=1 // pred_check_branch
      %27 = sbr.rel (0) target = $region13
    $region12: #{tpu_custom_call.1} parent=1 // pred_region
      _
    $region13: #{tpu_custom_call.1} parent=1 // pred_fallthru
      _
    // Predicated region
    $region14: #{tpu_custom_call.1} parent=1 // pred_check
      _
    $region15: #{tpu_custom_call.1} parent=1 // pred_check_branch
      %29 = sbr.rel (0) target = $region17
    $region16: #{tpu_custom_call.1} parent=1 // pred_region
      %31 = dma.done [#allocation5], 1024
    $region17: #{tpu_custom_call.1} parent=1 // pred_fallthru
      _
    %p32 = scmp.eq.s32.totalorder 0, 0
    // Predicated region
    $region18: #{tpu_custom_call.1} parent=1 // pred_check
      %p33 = pneg %p32
    $region19: #{tpu_custom_call.1} parent=1 // pred_check_branch
      %35 = sbr.rel (%p33) target = $region21
    $region20: #{tpu_custom_call.1} parent=1 // pred_region
      %vm36 = vcmask 7168
      %37 = vst.msk [vmem:[#allocation2] sm:$0xff] %vm36, 0
      %vm38 = vcmask 261120
      %39 = vst.msk [vmem:[#allocation3] sm:$0xff] %vm38, 0.0
    $region21: #{tpu_custom_call.1} parent=1 // pred_fallthru
      _
    %v40 = vld [vmem:[#allocation4] sm:$0xff]
    %v41 = vld [vmem:[#allocation4 + $0x8] sm:$0xff]
    %v42 = vld [vmem:[#allocation4 + $0x10] sm:$0xff]
    %v43 = vld [vmem:[#allocation4 + $0x18] sm:$0xff]
    %v44 = vld [vmem:[#allocation4 + $0x20] sm:$0xff]
    %v45 = vld [vmem:[#allocation4 + $0x28] sm:$0xff]
    %v46 = vld [vmem:[#allocation4 + $0x30] sm:$0xff]
    %v47 = vld [vmem:[#allocation4 + $0x38] sm:$0xff]
    %v48 = vand.u32 2147483647, %v40
    %v49 = vand.u32 2147483647, %v41
    %v50 = vand.u32 2147483647, %v42
    %v51 = vand.u32 2147483647, %v43
    %v52 = vand.u32 2147483647, %v44
    %v53 = vand.u32 2147483647, %v45
    %v54 = vand.u32 2147483647, %v46
    %v55 = vand.u32 2147483647, %v47
    %vm56 = vcmask 261120
    %v57 = vsel %vm56, %v48, 0.0
    %58 = vadd.xlane.f32.xlu0 %v57
    %v59 = vpop.xlane.xlu0 %58
    %v60 = vsel %vm56, %v49, 0.0
    %61 = vadd.xlane.f32.xlu0 %v60
    %v62 = vpop.xlane.xlu0 %61
    %v63 = vsel %vm56, %v50, 0.0
    %64 = vadd.xlane.f32.xlu0 %v63
    %v65 = vpop.xlane.xlu0 %64
    %v66 = vsel %vm56, %v51, 0.0
    %67 = vadd.xlane.f32.xlu0 %v66
    %v68 = vpop.xlane.xlu0 %67
    %v69 = vsel %vm56, %v52, 0.0
    %70 = vadd.xlane.f32.xlu0 %v69
    %v71 = vpop.xlane.xlu0 %70
    %v72 = vsel %vm56, %v53, 0.0
    %73 = vadd.xlane.f32.xlu0 %v72
    %v74 = vpop.xlane.xlu0 %73
    %v75 = vsel %vm56, %v54, 0.0
    %76 = vadd.xlane.f32.xlu0 %v75
    %v77 = vpop.xlane.xlu0 %76
    %v78 = vsel %vm56, %v55, 0.0
    %79 = vadd.xlane.f32.xlu0 %v78
    %v80 = vpop.xlane.xlu0 %79
    %vm81 = vcmp.gt.f32.partialorder %v59, 0.0
    %vm82 = vcmp.gt.f32.partialorder %v62, 0.0
    %vm83 = vcmp.gt.f32.partialorder %v65, 0.0
    %vm84 = vcmp.gt.f32.partialorder %v68, 0.0
    %vm85 = vcmp.gt.f32.partialorder %v71, 0.0
    %vm86 = vcmp.gt.f32.partialorder %v74, 0.0
    %vm87 = vcmp.gt.f32.partialorder %v77, 0.0
    %vm88 = vcmp.gt.f32.partialorder %v80, 0.0
    %v89 = vld [vmem:[#allocation2] sm:$0xff]
    %v90 = vsel %vm81, 1, 0
    %v91 = vsel %vm82, 1, 0
    %v92 = vsel %vm83, 1, 0
    %v93 = vsel %vm84, 1, 0
    %v94 = vsel %vm85, 1, 0
    %v95 = vsel %vm86, 1, 0
    %v96 = vsel %vm87, 1, 0
    %v97 = vsel %vm88, 1, 0
    %v98 = vlaneseq
    %v99 = vand.u32 %v98, 127
    %v100 = vperm.slane %v90, %v99
    %v101 = vperm.slane %v91, %v99
    %v102 = vperm.slane %v92, %v99
    %v103 = vperm.slane %v93, %v99
    %v104 = vperm.slane %v94, %v99
    %v105 = vperm.slane %v95, %v99
    %v106 = vperm.slane %v96, %v99
    %v107 = vperm.slane %v97, %v99
    %vm108 = vcmask 1041409
    %v109 = vsel %vm108, %v101, %v100
    %vm110 = vcmask 1042434
    %v111 = vsel %vm110, %v102, %v109
    %vm112 = vcmask 1043459
    %v113 = vsel %vm112, %v103, %v111
    %vm114 = vcmask 1044484
    %v115 = vsel %vm114, %v104, %v113
    %vm116 = vcmask 1045509
    %v117 = vsel %vm116, %v105, %v115
    %vm118 = vcmask 1046534
    %v119 = vsel %vm118, %v106, %v117
    %vm120 = vcmask 1047559
    %v121 = vsel %vm120, %v107, %v119
    %vm122 = vcmask 64512
    %v123 = vsel %vm122, %v121, 0
    %v124 = vand.u32 %v123, 65535
    %v125 = vshrl.u32 %v123, 16
    %v126 = vcvt.s32.f32 %v124
    %v127 = vcvt.s32.f32 %v125
    %128 = vadd.xlane.f32.xlu0 %v126
    %v129 = vpop.xlane.xlu0 %128
    %130 = vadd.xlane.f32.xlu0 %v127
    %v131 = vpop.xlane.xlu0 %130
    %v132 = vcvt.f32.s32 %v129
    %v133 = vcvt.f32.s32 %v131
    %v134 = vshll.u32 %v133, 16
    %v135 = vadd.s32 %v134, %v132
    %v136 = vadd.s32 %v89, %v135
    %vm137 = vcmask 7168
    %138 = vst.msk [vmem:[#allocation2] sm:$0xff] %vm137, %v136
    %v139 = vld [vmem:[#allocation3] sm:$0xff]
    %v140 = vsel %vm56, %v40, 0.0
    %v141 = vrot.slane %v140, 4
    %v142 = vadd.f32 %v140, %v141
    %v143 = vrot.slane %v142, 2
    %v144 = vadd.f32 %v142, %v143
    %v145 = vrot.slane %v144, 1
    %v146 = vadd.f32 %v144, %v145
    %v147 = vsel %vm56, %v41, 0.0
    %v148 = vrot.slane %v147, 4
    %v149 = vadd.f32 %v147, %v148
    %v150 = vrot.slane %v149, 2
    %v151 = vadd.f32 %v149, %v150
    %v152 = vrot.slane %v151, 1
    %v153 = vadd.f32 %v151, %v152
    %v154 = vsel %vm56, %v42, 0.0
    %v155 = vrot.slane %v154, 4
    %v156 = vadd.f32 %v154, %v155
    %v157 = vrot.slane %v156, 2
    %v158 = vadd.f32 %v156, %v157
    %v159 = vrot.slane %v158, 1
    %v160 = vadd.f32 %v158, %v159
    %v161 = vsel %vm56, %v43, 0.0
    %v162 = vrot.slane %v161, 4
    %v163 = vadd.f32 %v161, %v162
    %v164 = vrot.slane %v163, 2
    %v165 = vadd.f32 %v163, %v164
    %v166 = vrot.slane %v165, 1
    %v167 = vadd.f32 %v165, %v166
    %v168 = vsel %vm56, %v44, 0.0
    %v169 = vrot.slane %v168, 4
    %v170 = vadd.f32 %v168, %v169
    %v171 = vrot.slane %v170, 2
    %v172 = vadd.f32 %v170, %v171
    %v173 = vrot.slane %v172, 1
    %v174 = vadd.f32 %v172, %v173
    %v175 = vsel %vm56, %v45, 0.0
    %v176 = vrot.slane %v175, 4
    %v177 = vadd.f32 %v175, %v176
    %v178 = vrot.slane %v177, 2
    %v179 = vadd.f32 %v177, %v178
    %v180 = vrot.slane %v179, 1
    %v181 = vadd.f32 %v179, %v180
    %v182 = vsel %vm56, %v46, 0.0
    %v183 = vrot.slane %v182, 4
    %v184 = vadd.f32 %v182, %v183
    %v185 = vrot.slane %v184, 2
    %v186 = vadd.f32 %v184, %v185
    %v187 = vrot.slane %v186, 1
    %v188 = vadd.f32 %v186, %v187
    %v189 = vsel %vm56, %v47, 0.0
    %v190 = vrot.slane %v189, 4
    %v191 = vadd.f32 %v189, %v190
    %v192 = vrot.slane %v191, 2
    %v193 = vadd.f32 %v191, %v192
    %v194 = vrot.slane %v193, 1
    %v195 = vadd.f32 %v193, %v194
    %v204 = vsel %vm108, %v153, %v146
    %v205 = vsel %vm110, %v160, %v204
    %v206 = vsel %vm112, %v167, %v205
    %v207 = vsel %vm114, %v174, %v206
    %v208 = vsel %vm116, %v181, %v207
    %v209 = vsel %vm118, %v188, %v208
    %v210 = vsel %vm120, %v195, %v209
    %v212 = vadd.f32 %v139, %v210
    %213 = vst.msk [vmem:[#allocation3] sm:$0xff] %vm56, %v212
    // Predicated region
    $region22: #{tpu_custom_call.1} parent=1 // pred_check
      %p214 = pneg %p32
    $region23: #{tpu_custom_call.1} parent=1 // pred_check_branch
      %216 = sbr.rel (%p214) target = $region25
    $region24: #{tpu_custom_call.1} parent=1 // pred_region
      %v217 = vld [vmem:[#allocation2] sm:$0xff]
      %218 = vst.msk [vmem:[%s3] sm:$0xff] %vm137, %v217
      %v219 = vcvt.s32.f32 %v217
      %v220 = vmax.f32 %v219, 1.0
      %v221 = vld [vmem:[#allocation3] sm:$0xff]
      %v222 = vld [vmem:[%s1] sm:$0xff]
      %v223 = vld [vmem:[%s1 + $0x8] sm:$0xff]
      %v224 = vld [vmem:[%s1 + $0x10] sm:$0xff]
      %v225 = vld [vmem:[%s1 + $0x18] sm:$0xff]
      %v227 = vsel %vm56, %v221, 0
      %229 = vmatpush.msra.mxu0 0.0
      %230 = vmatpush.msra.mxu0 0.0
      %231 = vmatpush.msra.mxu0 0.0
      %232 = vmatpush.msra.mxu0 0.0
      %233 = vmatpush.msra.mxu0 0.0
      %234 = vmatpush.msra.mxu0 0.0
      %235 = vmatpush.msra.mxu0 0.0
      %236 = vmatpush.msra.mxu0 0.0
      %237 = vmatpush.msra.mxu0 0.0
      %238 = vmatpush.msra.mxu0 0.0
      %239 = vmatpush.msra.mxu0 0.0
      %240 = vmatpush.msra.mxu0 0.0
      %241 = vmatpush.msra.mxu0 %v225
      %242 = vmatpush.msra.mxu0 %v224
      %243 = vmatpush.msra.mxu0 %v223
      %244 = vmatpush.msra.mxu0 %v222
      %245 = vmatmul.f32.gmra.mxu0 %v227
      %v246 = vpop.f32.mrf.mxu0
      %v247 = vadd.f32 0.0, %v246
      %248 = vdwg.mxu0
      %250 = vset.pattern.permute.xlu0 0
      %251 = vperm.xlu0 %250, %v220
      %v252 = vpop.permute.xlu0 %251
      %v254 = vrcp.pop %v252
      %v255 = vmul.f32 %v252, %v254
      %v256 = vsub.f32 1.0, %v255
      %v257 = vmul.f32 %v254, %v256
      %v258 = vadd.f32 %v254, %v257
      %vm259 = vweird.f32 %v252
      %vm260 = vweird.f32 %v254
      %vm261 = vmor %vm259, %vm260
      %v262 = vsel %vm261, %v254, %v258
      %v263 = vand.u32 2147483647, %v252
      %vm264 = vcmp.eq.f32.partialorder %v263, 8.507059e+37
      %v265 = vand.u32 %v252, 2147483648
      %v266 = vor.u32 1.1754944e-38, %v265
      %v267 = vsel %vm264, %v266, %v262
      %v268 = vmul.f32 %v247, %v267
      %v269 = vld [vmem:[%s2] sm:$0x1]
      %v271 = vperm.slane %v269, 0
      %v273 = vadd.f32 %v268, %v271
      %vm274 = vcmask 31744
      %275 = vst.msk [vmem:[%s4] sm:$0xff] %vm274, %v273
    $region25: #{tpu_custom_call.1} parent=1 // pred_fallthru
      _
    // Predicated region
    $region26: #{tpu_custom_call.1} parent=1 // pred_check
      _
    $region27: #{tpu_custom_call.1} parent=1 // pred_check_branch
      %277 = sbr.rel (0) target = $region29
    $region28: #{tpu_custom_call.1} parent=1 // pred_region
      _
    $region29: #{tpu_custom_call.1} parent=1 // pred_fallthru
      _
    // Predicated region
    $region30: #{tpu_custom_call.1} parent=1 // pred_check
      _
    $region31: #{tpu_custom_call.1} parent=1 // pred_check_branch
      %279 = sbr.rel (0) target = $region33
    $region32: #{tpu_custom_call.1} parent=1 // pred_region
      _
    $region33: #{tpu_custom_call.1} parent=1 // pred_fallthru
      _
    // Predicated region
    $region34: #{tpu_custom_call.1} parent=1 // pred_check
      _
    $region35: #{tpu_custom_call.1} parent=1 // pred_check_branch
      %281 = sbr.rel (0) target = $region37
    $region36: #{tpu_custom_call.1} parent=1 // pred_region
      _
    $region37: #{tpu_custom_call.1} parent=1 // pred_fallthru
      _
    // Predicated region
    $region38: #{tpu_custom_call.1} parent=1 // pred_check
      _
    $region39: #{tpu_custom_call.1} parent=1 // pred_check_branch
      %283 = sbr.rel (0) target = $region41
    $region40: #{tpu_custom_call.1} parent=1 // pred_region
      _
    $region41: #{tpu_custom_call.1} parent=1 // pred_fallthru
      _
    %284 = vsyncpa [#allocation5], 1

</llo_original>
